<compile_context>
chip_gen: v5e
topology: v5e:2x2
jax: 0.10.0
libtpu: 0.0.40
codegen_flags: <defaults>
</compile_context>

<pallas_src>
import functools
import math

import jax
import jax.numpy as jnp
from jax import lax
from jax.experimental import pallas as pl
from jax.experimental.pallas import tpu as pltpu


def _round_up(x, m):
    return ((x + m - 1) // m) * m


# ----------------------------------------------------------------------------
# Kernel 1: per-edge attention math for ALL heads of one SpGraphAttentionLayer
# ----------------------------------------------------------------------------
def _edge_kernel(idx_ref, x_ref, eemb_ref, a_ref, a2_ref, o_ref, eh_ref, *,
                 tile_e, in_dim, rel_dim, nhid, nheads, dh_pad, alpha):
    """
    idx_ref : SMEM (2, E_pad) int32   scalar-prefetched edge endpoints (gather indices)
    x_ref   : VMEM (N, in_dim)        node features (whole matrix for random access)
    eemb_ref: VMEM (tile_e, rel_dim)  per-edge relation embeddings (this edge tile)
    a_ref   : VMEM (K_pad, W)         packed per-head attention weights a^T, zero padded
    a2_ref  : VMEM (nheads, DH_pad)   packed per-head a_2, zero padded
    o_ref   : VMEM (tile_e, W)        scatter payload: per head block cols [0:nhid] =
                                      edge_e*edge_m, col nhid = edge_e, rest 0
    eh_ref  : VMEM (tile_e, K_pad)    gather staging buffer [x_src | x_dst | eemb | 0]
    """
    e0 = pl.program_id(0) * tile_e

    # Zero the staging buffer (scratch may hold stale VMEM; padding columns must be 0).
    eh_ref[...] = jnp.zeros_like(eh_ref)
    # Bulk copy of the relation-embedding slice into its column range.
    eh_ref[:, 2 * in_dim:2 * in_dim + rel_dim] = eemb_ref[...]

    # Real O(E*in_dim) row gather (replaces the old O(N*E*in_dim) one-hot matmul).
    def gather_one(e, carry):
        s = idx_ref[0, e0 + e]                    # SMEM scalar reads
        d = idx_ref[1, e0 + e]
        eh_ref[pl.ds(e, 1), 0:in_dim] = x_ref[pl.ds(s, 1), :]
        eh_ref[pl.ds(e, 1), in_dim:2 * in_dim] = x_ref[pl.ds(d, 1), :]
        return carry

    lax.fori_loop(0, tile_e, gather_one, 0)

    # One lane-dense MXU matmul for all heads: (tile_e, K_pad) @ (K_pad, W).
    edge_m = jnp.dot(eh_ref[...], a_ref[...], preferred_element_type=jnp.float32)

    col = lax.broadcasted_iota(jnp.int32, (tile_e, dh_pad), 1)
    for h in range(nheads):                        # nheads is small; unrolled
        blk = edge_m[:, h * dh_pad:(h + 1) * dh_pad]           # (tile_e, DH_pad)
        a2h = a2_ref[h:h + 1, :]                               # (1, DH_pad), zero padded
        # attention logit on the VPU/XLU instead of a width-1 MXU matmul
        p = jnp.sum(blk * a2h, axis=-1, keepdims=True)         # (tile_e, 1)
        powers = -jnp.where(p > 0, p, alpha * p)               # -leakyrelu(p)
        edge_e = jnp.exp(powers)                               # (tile_e, 1)
        # payload: cols [0:nhid] = edge_e * edge_m ; col nhid carries edge_e (-> e_rowsum)
        payload_h = edge_e * blk + jnp.where(col == nhid, edge_e, 0.0)
        o_ref[:, h * dh_pad:(h + 1) * dh_pad] = payload_h


# ----------------------------------------------------------------------------
# Kernel 2: scatter-add by edge[0] + per-head softmax normalisation (+ optional ELU)
# ----------------------------------------------------------------------------
def _scatter_kernel(row_ref, pay_ref, o_ref, acc_ref, *,
                    tile_n, tile_e, nhid, nheads, dh_pad, apply_elu):
    """
    grid = (node tiles [parallel], edge tiles [arbitrary]); accumulate in VMEM scratch.
    row_ref : VMEM (1, tile_e) int32  scatter row per edge (-1 for padding edges)
    pay_ref : VMEM (tile_e, W)        payload from the edge kernel
    o_ref   : VMEM (tile_n, W)        per head block: cols [0:nhid] = normalised output
    acc_ref : VMEM (tile_n, W) f32    running scatter accumulator
    """
    n_i = pl.program_id(0)
    e_i = pl.program_id(1)

    @pl.when(e_i == 0)
    def _init():
        acc_ref[...] = jnp.zeros_like(acc_ref)

    rows = row_ref[...]                                               # (1, tile_e)
    node_ids = lax.broadcasted_iota(jnp.int32, (tile_n, tile_e), 0) + n_i * tile_n
    onehot = (node_ids == rows).astype(jnp.float32)                   # (tile_n, tile_e)
    # One fused MXU matmul produces h_prime (cols [0:nhid]) and e_rowsum (col nhid).
    acc_ref[...] += jnp.dot(onehot, pay_ref[...], preferred_element_type=jnp.float32)

    @pl.when(e_i == pl.num_programs(1) - 1)
    def _finalize():
        for h in range(nheads):
            blk = acc_ref[:, h * dh_pad:(h + 1) * dh_pad]             # (tile_n, DH_pad)
            rowsum = blk[:, nhid:nhid + 1] + 1e-12                    # e_rowsum + eps
            out = blk / rowsum
            if apply_elu:                                             # F.elu (concat=True)
                out = jnp.where(out > 0, out, jnp.exp(jnp.minimum(out, 0.0)) - 1.0)
            o_ref[:, h * dh_pad:(h + 1) * dh_pad] = out.astype(o_ref.dtype)


# ----------------------------------------------------------------------------
# Layer wrapper: all heads of one SpGraphAttentionLayer in two tiled pallas_calls
# ----------------------------------------------------------------------------
def sp_multihead_attention_layer(x, edge_idx, edge_embed, a_heads, a2_heads, *,
                                 alpha, apply_elu, tile_e=128):
    x = x.astype(jnp.float32)
    N, in_dim = x.shape
    E = int(edge_idx.shape[1])
    rel_dim = int(edge_embed.shape[1])
    nheads = len(a_heads)
    nhid = int(a_heads[0].shape[0])

    k_real = 2 * in_dim + rel_dim
    k_pad = _round_up(k_real, 128)
    dh_pad = _round_up(nhid + 1, 128)      # spare lane (col nhid) carries edge_e/e_rowsum
    w = nheads * dh_pad
    e_pad = _round_up(max(E, 1), tile_e)
    tile_n = min(128, _round_up(N, 8))
    n_pad = _round_up(N, tile_n)
    num_e_tiles = e_pad // tile_e
    num_n_tiles = n_pad // tile_n

    # Pack + zero-pad parameters into lane-dense slabs (zero padding keeps the math exact).
    a_cat = jnp.zeros((k_pad, w), jnp.float32)
    a2_cat = jnp.zeros((nheads, dh_pad), jnp.float32)
    for h, (a_h, a2_h) in enumerate(zip(a_heads, a2_heads)):
        a_cat = a_cat.at[:k_real, h * dh_pad:h * dh_pad + nhid].set(
            jnp.asarray(a_h, jnp.float32).T)
        a2_cat = a2_cat.at[h, :nhid].set(jnp.asarray(a2_h, jnp.float32).reshape(-1))

    edge_idx = edge_idx.astype(jnp.int32)
    gather_idx = jnp.zeros((2, e_pad), jnp.int32).at[:, :E].set(edge_idx)     # pad -> row 0
    scatter_row = jnp.full((1, e_pad), -1, jnp.int32).at[0, :E].set(edge_idx[0])  # pad -> -1
    eemb_pad = jnp.zeros((e_pad, rel_dim), jnp.float32).at[:E, :].set(
        edge_embed.astype(jnp.float32))

    vmem_budget = 48 * 1024 * 1024   # fits v7x's 64 MiB VMEM as well as v5e/v6e

    edge_kernel = functools.partial(
        _edge_kernel, tile_e=tile_e, in_dim=in_dim, rel_dim=rel_dim,
        nhid=nhid, nheads=nheads, dh_pad=dh_pad, alpha=float(alpha))
    # TODO(synk): for graphs whose node table does not fit VMEM, replace the whole-x
    # residency with a manual DMA gather (pltpu.make_async_copy per edge tile).
    payload = pl.pallas_call(
        edge_kernel,
        out_shape=jax.ShapeDtypeStruct((e_pad, w), jnp.float32),
        grid_spec=pltpu.PrefetchScalarGridSpec(
            num_scalar_prefetch=1,
            grid=(num_e_tiles,),
            in_specs=[pl.BlockSpec((N, in_dim), lambda e, idx: (0, 0)),
                      pl.BlockSpec((tile_e, rel_dim), lambda e, idx: (e, 0)),
                      pl.BlockSpec((k_pad, w), lambda e, idx: (0, 0)),
                      pl.BlockSpec((nheads, dh_pad), lambda e, idx: (0, 0))],
            out_specs=pl.BlockSpec((tile_e, w), lambda e, idx: (e, 0)),
            scratch_shapes=[pltpu.VMEM((tile_e, k_pad), jnp.float32)]),
        compiler_params=pltpu.CompilerParams(
            dimension_semantics=("parallel",),
            vmem_limit_bytes=vmem_budget),
    )(gather_idx, x, eemb_pad, a_cat, a2_cat)

    scatter_kernel = functools.partial(
        _scatter_kernel, tile_n=tile_n, tile_e=tile_e, nhid=nhid, nheads=nheads,
        dh_pad=dh_pad, apply_elu=apply_elu)
    out_pad = pl.pallas_call(
        scatter_kernel,
        out_shape=jax.ShapeDtypeStruct((n_pad, w), jnp.float32),
        grid_spec=pltpu.PrefetchScalarGridSpec(
            num_scalar_prefetch=0,
            grid=(num_n_tiles, num_e_tiles),
            in_specs=[pl.BlockSpec((1, tile_e), lambda n, e: (0, e)),
                      pl.BlockSpec((tile_e, w), lambda n, e: (e, 0))],
            out_specs=pl.BlockSpec((tile_n, w), lambda n, e: (n, 0)),
            scratch_shapes=[pltpu.VMEM((tile_n, w), jnp.float32)]),
        compiler_params=pltpu.CompilerParams(
            dimension_semantics=("parallel", "arbitrary"),
            vmem_limit_bytes=vmem_budget),
    )(scatter_row, payload)

    heads_out = [out_pad[:N, h * dh_pad:h * dh_pad + nhid] for h in range(nheads)]
    return jnp.concatenate(heads_out, axis=1)


# ----------------------------------------------------------------------------
# Tiled accumulator matmul for the relation projection relation_embed @ W
# ----------------------------------------------------------------------------
def _matmul_kernel(a_ref, b_ref, o_ref, acc_ref):
    @pl.when(pl.program_id(2) == 0)
    def _init():
        acc_ref[...] = jnp.zeros_like(acc_ref)

    acc_ref[...] += jnp.dot(a_ref[...], b_ref[...], preferred_element_type=jnp.float32)

    @pl.when(pl.program_id(2) == pl.num_programs(2) - 1)
    def _store():
        o_ref[...] = acc_ref[...].astype(o_ref.dtype)


def pallas_matmul(a, b, *, tm=128, tn=128, tk=128):
    a = a.astype(jnp.float32)
    b = b.astype(jnp.float32)
    M, K = a.shape
    _, N = b.shape
    tm = min(tm, _round_up(M, 8))
    tn = min(tn, _round_up(N, 128))
    tk = min(tk, _round_up(K, 128))
    Mp, Kp, Np = _round_up(M, tm), _round_up(K, tk), _round_up(N, tn)
    a_p = jnp.zeros((Mp, Kp), jnp.float32).at[:M, :K].set(a)
    b_p = jnp.zeros((Kp, Np), jnp.float32).at[:K, :N].set(b)
    out = pl.pallas_call(
        _matmul_kernel,
        out_shape=jax.ShapeDtypeStruct((Mp, Np), jnp.float32),
        grid_spec=pltpu.PrefetchScalarGridSpec(
            num_scalar_prefetch=0,
            grid=(Mp // tm, Np // tn, Kp // tk),
            in_specs=[pl.BlockSpec((tm, tk), lambda i, j, k: (i, k)),
                      pl.BlockSpec((tk, tn), lambda i, j, k: (k, j))],
            out_specs=pl.BlockSpec((tm, tn), lambda i, j, k: (i, j)),
            scratch_shapes=[pltpu.VMEM((tm, tn), jnp.float32)]),
        compiler_params=pltpu.CompilerParams(
            dimension_semantics=("parallel", "parallel", "arbitrary"),
            vmem_limit_bytes=48 * 1024 * 1024),
    )(a_p, b_p)
    return out[:M, :N]


# ----------------------------------------------------------------------------
# Parameter init (deterministic, mimics torch xavier init shapes/statistics)
# ----------------------------------------------------------------------------
def xavier_uniform(key, shape, gain):
    fan_out, fan_in = shape[0], shape[1]
    bound = gain * math.sqrt(6.0 / (fan_in + fan_out))
    return jax.random.uniform(key, shape, jnp.float32, -bound, bound)


def xavier_normal(key, shape, gain):
    fan_out, fan_in = shape[0], shape[1]
    std = gain * math.sqrt(2.0 / (fan_in + fan_out))
    return std * jax.random.normal(key, shape, jnp.float32)


def init_spgat_params(key, nfeat, nhid, relation_dim, nheads):
    gain = 1.414
    keys = jax.random.split(key, 2 * nheads + 3)
    heads = []
    for h in range(nheads):
        a = xavier_normal(keys[2 * h], (nhid, 2 * nfeat + relation_dim), gain)
        a2 = xavier_normal(keys[2 * h + 1], (1, nhid), gain)
        heads.append((a, a2))
    W = xavier_uniform(keys[-3], (relation_dim, nheads * nhid), gain)
    out_in = nhid * nheads
    out_a = xavier_normal(keys[-2], (nheads * nhid, 2 * out_in + nheads * nhid), gain)
    out_a2 = xavier_normal(keys[-1], (1, nheads * nhid), gain)
    return {"heads": heads, "W": W, "out_a": out_a, "out_a2": out_a2}


# ----------------------------------------------------------------------------
# SpGAT forward (glue in plain JAX; hot paths in the Pallas kernels above)
# ----------------------------------------------------------------------------
def spgat_forward(params, entity_embeddings, relation_embed, edge_list, edge_type,
                  edge_embed, edge_list_nhop, edge_type_nhop, *, alpha):
    a_heads = [a for (a, _) in params["heads"]]
    a2_heads = [a2 for (_, a2) in params["heads"]]

    if edge_type_nhop.shape[0] == 0:
        edge_all, eemb_all = edge_list, edge_embed
    else:
        eemb_nhop = (relation_embed[edge_type_nhop[:, 0]]
                     + relation_embed[edge_type_nhop[:, 1]])
        edge_all = jnp.concatenate([edge_list, edge_list_nhop], axis=1)
        eemb_all = jnp.concatenate([edge_embed, eemb_nhop], axis=0)

    # multi-head attention layer (concat=True -> per-head F.elu inside the kernel)
    x = sp_multihead_attention_layer(entity_embeddings, edge_all, eemb_all,
                                     a_heads, a2_heads, alpha=alpha, apply_elu=True)
    # TODO(synk): nn.Dropout layers are eval-mode identities here (deterministic forward).

    # relation projection on the MXU
    out_relation_1 = pallas_matmul(relation_embed, params["W"])

    eemb2 = out_relation_1[edge_type]
    if edge_type_nhop.shape[0] == 0:
        edge_all2, eemb_all2 = edge_list, eemb2
    else:
        eemb2_nhop = (out_relation_1[edge_type_nhop[:, 0]]
                      + out_relation_1[edge_type_nhop[:, 1]])
        edge_all2 = jnp.concatenate([edge_list, edge_list_nhop], axis=1)
        eemb_all2 = jnp.concatenate([eemb2, eemb2_nhop], axis=0)

    # out_att has concat=False (no ELU inside); SpGAT applies F.elu afterwards.
    h = sp_multihead_attention_layer(x, edge_all2, eemb_all2,
                                     [params["out_a"]], [params["out_a2"]],
                                     alpha=alpha, apply_elu=False)
    x = jnp.where(h > 0, h, jnp.exp(jnp.minimum(h, 0.0)) - 1.0)     # F.elu
    return x, out_relation_1


# ----------------------------------------------------------------------------
# Pure-JAX reference (same formulas; used only for a correctness self-check)
# ----------------------------------------------------------------------------
def _layer_ref(x, edge_idx, edge_embed, a_heads, a2_heads, *, alpha, apply_elu):
    x = x.astype(jnp.float32)
    N = x.shape[0]
    src = edge_idx[0]
    edge_h = jnp.concatenate([x[edge_idx[0]], x[edge_idx[1]],
                              edge_embed.astype(jnp.float32)], axis=1)
    hp = lax.Precision.HIGHEST
    outs = []
    for a_h, a2_h in zip(a_heads, a2_heads):
        edge_m = jnp.einsum('ek,ok->eo', edge_h, a_h.astype(jnp.float32), precision=hp)
        p = jnp.einsum('eo,o->e', edge_m, a2_h.reshape(-1).astype(jnp.float32),
                       precision=hp)
        powers = -jnp.where(p > 0, p, alpha * p)
        edge_e = jnp.exp(powers)
        e_rowsum = jax.ops.segment_sum(edge_e, src, num_segments=N) + 1e-12
        h_prime = jax.ops.segment_sum(edge_e[:, None] * edge_m, src, num_segments=N)
        h = h_prime / e_rowsum[:, None]
        if apply_elu:
            h = jnp.where(h > 0, h, jnp.exp(jnp.minimum(h, 0.0)) - 1.0)
        outs.append(h)
    return jnp.concatenate(outs, axis=1)


def spgat_forward_ref(params, entity_embeddings, relation_embed, edge_list, edge_type,
                      edge_embed, edge_list_nhop, edge_type_nhop, *, alpha):
    hp = lax.Precision.HIGHEST
    a_heads = [a for (a, _) in params["heads"]]
    a2_heads = [a2 for (_, a2) in params["heads"]]
    if edge_type_nhop.shape[0] == 0:
        edge_all, eemb_all = edge_list, edge_embed
    else:
        eemb_nhop = (relation_embed[edge_type_nhop[:, 0]]
                     + relation_embed[edge_type_nhop[:, 1]])
        edge_all = jnp.concatenate([edge_list, edge_list_nhop], axis=1)
        eemb_all = jnp.concatenate([edge_embed, eemb_nhop], axis=0)
    x = _layer_ref(entity_embeddings, edge_all, eemb_all, a_heads, a2_heads,
                   alpha=alpha, apply_elu=True)
    out_relation_1 = jnp.einsum('rk,ko->ro', relation_embed.astype(jnp.float32),
                                params["W"], precision=hp)
    eemb2 = out_relation_1[edge_type]
    if edge_type_nhop.shape[0] == 0:
        edge_all2, eemb_all2 = edge_list, eemb2
    else:
        eemb2_nhop = (out_relation_1[edge_type_nhop[:, 0]]
                      + out_relation_1[edge_type_nhop[:, 1]])
        edge_all2 = jnp.concatenate([edge_list, edge_list_nhop], axis=1)
        eemb_all2 = jnp.concatenate([eemb2, eemb2_nhop], axis=0)
    h = _layer_ref(x, edge_all2, eemb_all2, [params["out_a"]], [params["out_a2"]],
                   alpha=alpha, apply_elu=False)
    x = jnp.where(h > 0, h, jnp.exp(jnp.minimum(h, 0.0)) - 1.0)
    return x, out_relation_1


# ----------------------------------------------------------------------------
# Demo
# ----------------------------------------------------------------------------
if __name__ == "__main__":
    num_nodes = 16      # N
    nfeat = 8           # entity input embedding dim
    nhid = 8            # entity output embedding dim per head
    relation_dim = 8
    nheads = 2
    num_relations = 4
    E = 20              # 1-hop edges
    E_nhop = 6          # n-hop edges
    alpha = 0.2         # LeakyReLU slope

    key = jax.random.PRNGKey(0)
    k_param, k_ent, k_rel, k_e1, k_e2, k_t1, k_t2 = jax.random.split(key, 7)

    params = init_spgat_params(k_param, nfeat, nhid, relation_dim, nheads)

    entity_embeddings = jax.random.normal(k_ent, (num_nodes, nfeat), jnp.float32)
    relation_embed = jax.random.normal(k_rel, (num_relations, relation_dim), jnp.float32)

    edge_list = jax.random.randint(k_e1, (2, E), 0, num_nodes, jnp.int32)
    edge_type = jax.random.randint(k_t1, (E,), 0, num_relations, jnp.int32)
    edge_embed = relation_embed[edge_type]                       # (E, relation_dim)

    edge_list_nhop = jax.random.randint(k_e2, (2, E_nhop), 0, num_nodes, jnp.int32)
    edge_type_nhop = jax.random.randint(k_t2, (E_nhop, 2), 0, num_relations, jnp.int32)

    x_out, out_relation_1 = spgat_forward(
        params, entity_embeddings, relation_embed, edge_list, edge_type,
        edge_embed, edge_list_nhop, edge_type_nhop, alpha=alpha)
    jax.block_until_ready((x_out, out_relation_1))

    assert x_out.shape == (num_nodes, nheads * nhid)
    assert out_relation_1.shape == (num_relations, nheads * nhid)
    assert not bool(jnp.isnan(x_out).any())
    assert not bool(jnp.isnan(out_relation_1).any())

    # Correctness self-check against a pure-JAX reference (tolerance covers MXU rounding).
    x_ref, rel_ref = spgat_forward_ref(
        params, entity_embeddings, relation_embed, edge_list, edge_type,
        edge_embed, edge_list_nhop, edge_type_nhop, alpha=alpha)
    assert bool(jnp.allclose(out_relation_1, rel_ref, rtol=2e-3, atol=2e-3))
    assert bool(jnp.allclose(x_out, x_ref, rtol=2e-3, atol=2e-3))

    print("KERNEL_OK")
</pallas_src>

<mosaic_0001>
module attributes {stable_mosaic.version = 11 : i64} {
  func.func @_edge_kernel(%arg0: i32, %arg1: memref<2x128xi32, #tpu.memory_space<smem>>, %arg2: memref<16x8xf32, #tpu.memory_space<vmem>>, %arg3: memref<128x8xf32, #tpu.memory_space<vmem>>, %arg4: memref<128x256xf32, #tpu.memory_space<vmem>>, %arg5: memref<2x128xf32, #tpu.memory_space<vmem>>, %arg6: memref<128x256xf32, #tpu.memory_space<vmem>>, %arg7: memref<128x128xf32, #tpu.memory_space<vmem>>) attributes {dimension_semantics = [#tpu.dimension_semantics<parallel>], iteration_bounds = array<i64: 1>, scalar_prefetch = 1 : i64, scratch_operands = 1 : i64, tpu.core_type = #tpu.core_type<tc>, window_params = [{pipeline_mode = #tpu.pipeline_mode<synchronous>, transform_indices = @transform_0, window_bounds = array<i64: 16, 8>}, {transform_indices = @transform_1, window_bounds = array<i64: 128, 8>}, {pipeline_mode = #tpu.pipeline_mode<synchronous>, transform_indices = @transform_2, window_bounds = array<i64: 128, 256>}, {pipeline_mode = #tpu.pipeline_mode<synchronous>, transform_indices = @transform_3, window_bounds = array<i64: 2, 128>}, {transform_indices = @transform_4, window_bounds = array<i64: 128, 256>}]} {
    %c128_i32 = arith.constant 128 : i32
    %0 = arith.muli %arg0, %c128_i32 : i32
    %cst = arith.constant 0.000000e+00 : f32
    %1 = vector.broadcast %cst : f32 to vector<128x128xf32>
    %c0 = arith.constant 0 : index
    %c0_0 = arith.constant 0 : index
    %2 = vector.load %arg7[%c0, %c0_0] : memref<128x128xf32, #tpu.memory_space<vmem>>, vector<128x128xf32>
    tpu.vector_store %arg7[%c0, %c0_0], %1 {strides = array<i32>} : memref<128x128xf32, #tpu.memory_space<vmem>>, vector<128x128xf32>,
    %c0_1 = arith.constant 0 : index
    %c0_2 = arith.constant 0 : index
    %3 = vector.load %arg3[%c0_1, %c0_2] : memref<128x8xf32, #tpu.memory_space<vmem>>, vector<128x8xf32>
    %c0_3 = arith.constant 0 : index
    %c16 = arith.constant 16 : index
    %4 = vector.load %arg7[%c0_3, %c16] : memref<128x128xf32, #tpu.memory_space<vmem>>, vector<128x8xf32>
    tpu.vector_store %arg7[%c0_3, %c16], %3 {strides = array<i32>} : memref<128x128xf32, #tpu.memory_space<vmem>>, vector<128x8xf32>,
    %c0_i32 = arith.constant 0 : i32
    %c128_i32_4 = arith.constant 128 : i32
    %5 = arith.addi %c0_i32, %c128_i32_4 : i32
    %c1_i32 = arith.constant 1 : i32
    scf.for %arg8 = %c0_i32 to %5 step %c1_i32  : i32 {
      %58 = arith.addi %0, %arg8 : i32
      %c0_28 = arith.constant 0 : index
      %59 = arith.index_cast %58 : i32 to index
      %60 = memref.load %arg1[%c0_28, %59] : memref<2x128xi32, #tpu.memory_space<smem>>
      %61 = arith.addi %0, %arg8 : i32
      %c1_29 = arith.constant 1 : index
      %62 = arith.index_cast %61 : i32 to index
      %63 = memref.load %arg1[%c1_29, %62] : memref<2x128xi32, #tpu.memory_space<smem>>
      %64 = arith.index_cast %60 : i32 to index
      %c0_30 = arith.constant 0 : index
      %65 = vector.load %arg2[%64, %c0_30] : memref<16x8xf32, #tpu.memory_space<vmem>>, vector<1x8xf32>
      %66 = arith.index_cast %arg8 : i32 to index
      %c0_31 = arith.constant 0 : index
      %67 = vector.load %arg7[%66, %c0_31] : memref<128x128xf32, #tpu.memory_space<vmem>>, vector<1x8xf32>
      tpu.vector_store %arg7[%66, %c0_31], %65 {strides = array<i32>} : memref<128x128xf32, #tpu.memory_space<vmem>>, vector<1x8xf32>,
      %68 = arith.index_cast %63 : i32 to index
      %c0_32 = arith.constant 0 : index
      %69 = vector.load %arg2[%68, %c0_32] : memref<16x8xf32, #tpu.memory_space<vmem>>, vector<1x8xf32>
      %70 = arith.index_cast %arg8 : i32 to index
      %c8 = arith.constant 8 : index
      %71 = vector.load %arg7[%70, %c8] : memref<128x128xf32, #tpu.memory_space<vmem>>, vector<1x8xf32>
      tpu.vector_store %arg7[%70, %c8], %69 {strides = array<i32>} : memref<128x128xf32, #tpu.memory_space<vmem>>, vector<1x8xf32>,
    }
    %c128_i32_5 = arith.constant 128 : i32
    %c0_6 = arith.constant 0 : index
    %c0_7 = arith.constant 0 : index
    %6 = vector.load %arg7[%c0_6, %c0_7] : memref<128x128xf32, #tpu.memory_space<vmem>>, vector<128x128xf32>
    %c0_8 = arith.constant 0 : index
    %c0_9 = arith.constant 0 : index
    %7 = vector.load %arg4[%c0_8, %c0_9] : memref<128x256xf32, #tpu.memory_space<vmem>>, vector<128x256xf32>
    %cst_10 = arith.constant dense<0.000000e+00> : vector<128x256xf32>
    %8 = tpu.matmul %6, %7, %cst_10 {dimension_numbers = #tpu.dot_dimension_numbers<[1], [0], [0], [1], [0, 0, 1, 1], [], []>} : vector<128x128xf32>, vector<128x256xf32>, vector<128x256xf32> -> vector<128x256xf32>
    %9 = tpu.iota {dimensions = array<i32: 1>} : vector<128x128xi32>
    %10 = vector.extract_strided_slice %8 {offsets = [0, 0], sizes = [128, 128], strides = [1, 1]} : vector<128x256xf32> to vector<128x128xf32>
    %c0_11 = arith.constant 0 : index
    %c0_12 = arith.constant 0 : index
    %11 = vector.load %arg5[%c0_11, %c0_12] : memref<2x128xf32, #tpu.memory_space<vmem>>, vector<1x128xf32>
    %12 = vector.broadcast %11 : vector<1x128xf32> to vector<128x128xf32>
    %13 = arith.mulf %10, %12 : vector<128x128xf32>
    %cst_13 = arith.constant dense<0.000000e+00> : vector<128xf32>
    %14 = vector.multi_reduction <add>, %13, %cst_13 [1] : vector<128x128xf32> to vector<128xf32>
    %15 = vector.shape_cast %14 : vector<128xf32> to vector<128x1xf32>
    %cst_14 = arith.constant 0.000000e+00 : f32
    %16 = vector.broadcast %cst_14 : f32 to vector<128x1xf32>
    %17 = arith.cmpf ogt, %15, %16 : vector<128x1xf32>
    %cst_15 = arith.constant 2.000000e-01 : f32
    %18 = vector.broadcast %cst_15 : f32 to vector<128x1xf32>
    %19 = arith.mulf %18, %15 : vector<128x1xf32>
    %20 = arith.select %17, %15, %19 : vector<128x1xi1>, vector<128x1xf32>
    %cst_16 = arith.constant 0.000000e+00 : f32
    %21 = vector.broadcast %cst_16 : f32 to vector<128x1xf32>
    %22 = arith.subf %21, %20 : vector<128x1xf32>
    %23 = math.exp %22 : vector<128x1xf32>
    %24 = vector.broadcast %23 : vector<128x1xf32> to vector<128x128xf32>
    %25 = arith.mulf %24, %10 : vector<128x128xf32>
    %c8_i32 = arith.constant 8 : i32
    %26 = vector.broadcast %c8_i32 : i32 to vector<128x128xi32>
    %27 = arith.cmpi eq, %9, %26 : vector<128x128xi32>
    %cst_17 = arith.constant 0.000000e+00 : f32
    %28 = vector.shape_cast %23 : vector<128x1xf32> to vector<128x1xf32>
    %29 = vector.broadcast %28 : vector<128x1xf32> to vector<128x128xf32>
    %30 = vector.broadcast %cst_17 : f32 to vector<128x128xf32>
    %31 = arith.select %27, %29, %30 : vector<128x128xi1>, vector<128x128xf32>
    %32 = arith.addf %25, %31 : vector<128x128xf32>
    %c0_18 = arith.constant 0 : index
    %c0_19 = arith.constant 0 : index
    %33 = vector.load %arg6[%c0_18, %c0_19] : memref<128x256xf32, #tpu.memory_space<vmem>>, vector<128x128xf32>
    tpu.vector_store %arg6[%c0_18, %c0_19], %32 {strides = array<i32>} : memref<128x256xf32, #tpu.memory_space<vmem>>, vector<128x128xf32>,
    %34 = vector.extract_strided_slice %8 {offsets = [0, 128], sizes = [128, 128], strides = [1, 1]} : vector<128x256xf32> to vector<128x128xf32>
    %c1 = arith.constant 1 : index
    %c0_20 = arith.constant 0 : index
    %35 = vector.load %arg5[%c1, %c0_20] : memref<2x128xf32, #tpu.memory_space<vmem>>, vector<1x128xf32>
    %36 = vector.broadcast %35 : vector<1x128xf32> to vector<128x128xf32>
    %37 = arith.mulf %34, %36 : vector<128x128xf32>
    %cst_21 = arith.constant dense<0.000000e+00> : vector<128xf32>
    %38 = vector.multi_reduction <add>, %37, %cst_21 [1] : vector<128x128xf32> to vector<128xf32>
    %39 = vector.shape_cast %38 : vector<128xf32> to vector<128x1xf32>
    %cst_22 = arith.constant 0.000000e+00 : f32
    %40 = vector.broadcast %cst_22 : f32 to vector<128x1xf32>
    %41 = arith.cmpf ogt, %39, %40 : vector<128x1xf32>
    %cst_23 = arith.constant 2.000000e-01 : f32
    %42 = vector.broadcast %cst_23 : f32 to vector<128x1xf32>
    %43 = arith.mulf %42, %39 : vector<128x1xf32>
    %44 = arith.select %41, %39, %43 : vector<128x1xi1>, vector<128x1xf32>
    %cst_24 = arith.constant 0.000000e+00 : f32
    %45 = vector.broadcast %cst_24 : f32 to vector<128x1xf32>
    %46 = arith.subf %45, %44 : vector<128x1xf32>
    %47 = math.exp %46 : vector<128x1xf32>
    %48 = vector.broadcast %47 : vector<128x1xf32> to vector<128x128xf32>
    %49 = arith.mulf %48, %34 : vector<128x128xf32>
    %c8_i32_25 = arith.constant 8 : i32
    %50 = vector.broadcast %c8_i32_25 : i32 to vector<128x128xi32>
    %51 = arith.cmpi eq, %9, %50 : vector<128x128xi32>
    %cst_26 = arith.constant 0.000000e+00 : f32
    %52 = vector.shape_cast %47 : vector<128x1xf32> to vector<128x1xf32>
    %53 = vector.broadcast %52 : vector<128x1xf32> to vector<128x128xf32>
    %54 = vector.broadcast %cst_26 : f32 to vector<128x128xf32>
    %55 = arith.select %51, %53, %54 : vector<128x128xi1>, vector<128x128xf32>
    %56 = arith.addf %49, %55 : vector<128x128xf32>
    %c0_27 = arith.constant 0 : index
    %c128 = arith.constant 128 : index
    %57 = vector.load %arg6[%c0_27, %c128] : memref<128x256xf32, #tpu.memory_space<vmem>>, vector<128x128xf32>
    tpu.vector_store %arg6[%c0_27, %c128], %56 {strides = array<i32>} : memref<128x256xf32, #tpu.memory_space<vmem>>, vector<128x128xf32>,
    return
  }
  func.func @transform_0(%arg0: i32, %arg1: memref<2x128xi32, #tpu.memory_space<smem>>) -> (i32, i32) {
    %c0_i32 = arith.constant 0 : i32
    %c0_i32_0 = arith.constant 0 : i32
    %c0_i32_1 = arith.constant 0 : i32
    return %c0_i32, %c0_i32_0 : i32, i32
  }
  func.func @transform_1(%arg0: i32, %arg1: memref<2x128xi32, #tpu.memory_space<smem>>) -> (i32, i32) {
    %c0_i32 = arith.constant 0 : i32
    %c0_i32_0 = arith.constant 0 : i32
    return %arg0, %c0_i32 : i32, i32
  }
  func.func @transform_2(%arg0: i32, %arg1: memref<2x128xi32, #tpu.memory_space<smem>>) -> (i32, i32) {
    %c0_i32 = arith.constant 0 : i32
    %c0_i32_0 = arith.constant 0 : i32
    %c0_i32_1 = arith.constant 0 : i32
    return %c0_i32, %c0_i32_0 : i32, i32
  }
  func.func @transform_3(%arg0: i32, %arg1: memref<2x128xi32, #tpu.memory_space<smem>>) -> (i32, i32) {
    %c0_i32 = arith.constant 0 : i32
    %c0_i32_0 = arith.constant 0 : i32
    %c0_i32_1 = arith.constant 0 : i32
    return %c0_i32, %c0_i32_0 : i32, i32
  }
  func.func @transform_4(%arg0: i32, %arg1: memref<2x128xi32, #tpu.memory_space<smem>>) -> (i32, i32) {
    %c0_i32 = arith.constant 0 : i32
    %c0_i32_0 = arith.constant 0 : i32
    return %arg0, %c0_i32 : i32, i32
  }
}

</mosaic_0001>

<llo_original>
// kernel: tpu_custom_call.1
$region0: #{tpu_custom_call.1}
  #allocation0 [shape = 'u32[]', space=smem, size = 0x4, offset = 0x4, fixed_abs, tag = 'smem constant byte address 0x4 - core index']
  #allocation1 [shape = 'u32[72,128]{1,0:T(1,128)}', space=vmem, size = 0x9000, scoped, tag = 'internal scratch']
  #allocation2 [shape = 'f32[128,128]{1,0:T(8,128)}', space=vmem, size = 0x10000, scoped, tag = 'scratch operand']
  #allocation3 [shape = 's32[1]{0}', space=sflag, size = 0x4, scoped, tag = 'scoped memory for tpu_custom_call.1']
  #allocation4 [shape = 'u8[1024]{0}', space=smem, size = 0x400, scoped, tag = 'prefetched SMEM operand 0']
  %s0 = inlined_call_operand.vmem [shape: s32[2,128], index: 0, kind: input, shape index: {}]
  %s1 = inlined_call_operand.vmem [shape: f32[16,8], index: 1, kind: input, shape index: {}]
  %s2 = inlined_call_operand.vmem [shape: f32[128,8], index: 2, kind: input, shape index: {}]
  %s3 = inlined_call_operand.hbm [shape: f32[128,256], index: 3, kind: input, shape index: {}]
  %s4 = inlined_call_operand.vmem [shape: f32[2,128], index: 4, kind: input, shape index: {}]
  %s5 = inlined_call_operand.hbm [shape: f32[128,256], index: 5, kind: output, shape index: {}]
  %s6 = sld [smem:[#allocation0]]
  $region37: #{tpu_custom_call.1} parent=0
    _
  %s8 = ssub.s32 1, %s6
  %s9 = scalar_select 0, %s8, %s6
  %s11 = sshll.u32 %s0, 4
  %s12 = int_to_ptr.vmem [resolvable:$true] %s11
  %14 = dma.vmem_to_smem %s12, 32, [#allocation4], [#allocation3]
  %16 = dma.done [#allocation3], 32
  %17 = sfence
  $region1: #{tpu_custom_call.1} parent=0
    #allocation5 [shape = 'u8[131072]{0}', space=vmem, size = 0x20000, scoped, tag = 'input window, operand 3, single buffered']
    #allocation6 [shape = 's32[1]{0}', space=sflag, size = 0x4, scoped, tag = 'scoped memory for tpu_custom_call.1']
    #allocation7 [shape = 's32[1]{0}', space=sflag, size = 0x4, scoped, tag = 'scoped memory for tpu_custom_call.1']
    #allocation8 [shape = 'u8[131072]{0}', space=vmem, size = 0x20000, scoped, tag = 'output window, operand 0, single buffered']
    %18 = vsyncpa [#allocation6], 0
    %19 = vsyncpa [#allocation7], 0
    // Predicated region
    $region2: #{tpu_custom_call.1} parent=1 // pred_check
      _
    $region3: #{tpu_custom_call.1} parent=1 // pred_check_branch
      %21 = sbr.rel (0) target = $region5
    $region4: #{tpu_custom_call.1} parent=1 // pred_region
      _
    $region5: #{tpu_custom_call.1} parent=1 // pred_fallthru
      _
    // Predicated region
    $region6: #{tpu_custom_call.1} parent=1 // pred_check
      _
    $region7: #{tpu_custom_call.1} parent=1 // pred_check_branch
      %23 = sbr.rel (0) target = $region9
    $region8: #{tpu_custom_call.1} parent=1 // pred_region
      _
    $region9: #{tpu_custom_call.1} parent=1 // pred_fallthru
      _
    // Predicated region
    $region10: #{tpu_custom_call.1} parent=1 // pred_check
      _
    $region11: #{tpu_custom_call.1} parent=1 // pred_check_branch
      %25 = sbr.rel (0) target = $region13
    $region12: #{tpu_custom_call.1} parent=1 // pred_region
      %27 = vsyncadd [#allocation6], 0
      %s28 = sshll.u32 %s3, 4
      %s29 = int_to_ptr.hbm [resolvable:$true] %s28
      %s30 = sshll.u32 [#allocation5], 4
      %s31 = int_to_ptr.vmem [resolvable:$true] %s30
      %36 = dma.hbm_to_vmem [thread:$0]  %s29, 4096, %s31, [#allocation6], 256, 256, 16
    $region13: #{tpu_custom_call.1} parent=1 // pred_fallthru
      _
    // Predicated region
    $region14: #{tpu_custom_call.1} parent=1 // pred_check
      _
    $region15: #{tpu_custom_call.1} parent=1 // pred_check_branch
      %38 = sbr.rel (0) target = $region17
    $region16: #{tpu_custom_call.1} parent=1 // pred_region
      _
    $region17: #{tpu_custom_call.1} parent=1 // pred_fallthru
      _
    // Predicated region
    $region18: #{tpu_custom_call.1} parent=1 // pred_check
      _
    $region19: #{tpu_custom_call.1} parent=1 // pred_check_branch
      %40 = sbr.rel (0) target = $region21
    $region20: #{tpu_custom_call.1} parent=1 // pred_region
      %42 = dma.done [#allocation6], 4096
    $region21: #{tpu_custom_call.1} parent=1 // pred_fallthru
      _
    %s43 = smul.u32 0, 128
    %44 = vst [vmem:[#allocation2] sm:$0xff] 0.0
    %45 = vst [vmem:[#allocation2 + $0x8] sm:$0xff] 0.0
    %46 = vst [vmem:[#allocation2 + $0x10] sm:$0xff] 0.0
    %47 = vst [vmem:[#allocation2 + $0x18] sm:$0xff] 0.0
    %48 = vst [vmem:[#allocation2 + $0x20] sm:$0xff] 0.0
    %49 = vst [vmem:[#allocation2 + $0x28] sm:$0xff] 0.0
    %50 = vst [vmem:[#allocation2 + $0x30] sm:$0xff] 0.0
    %51 = vst [vmem:[#allocation2 + $0x38] sm:$0xff] 0.0
    %52 = vst [vmem:[#allocation2 + $0x40] sm:$0xff] 0.0
    %53 = vst [vmem:[#allocation2 + $0x48] sm:$0xff] 0.0
    %54 = vst [vmem:[#allocation2 + $0x50] sm:$0xff] 0.0
    %55 = vst [vmem:[#allocation2 + $0x58] sm:$0xff] 0.0
    %56 = vst [vmem:[#allocation2 + $0x60] sm:$0xff] 0.0
    %57 = vst [vmem:[#allocation2 + $0x68] sm:$0xff] 0.0
    %58 = vst [vmem:[#allocation2 + $0x70] sm:$0xff] 0.0
    %59 = vst [vmem:[#allocation2 + $0x78] sm:$0xff] 0.0
    %v60 = vld [vmem:[%s2] sm:$0xff]
    %v61 = vld [vmem:[%s2 + $0x8] sm:$0xff]
    %v62 = vld [vmem:[%s2 + $0x10] sm:$0xff]
    %v63 = vld [vmem:[%s2 + $0x18] sm:$0xff]
    %v64 = vld [vmem:[%s2 + $0x20] sm:$0xff]
    %v65 = vld [vmem:[%s2 + $0x28] sm:$0xff]
    %v66 = vld [vmem:[%s2 + $0x30] sm:$0xff]
    %v67 = vld [vmem:[%s2 + $0x38] sm:$0xff]
    %v68 = vld [vmem:[%s2 + $0x40] sm:$0xff]
    %v69 = vld [vmem:[%s2 + $0x48] sm:$0xff]
    %v70 = vld [vmem:[%s2 + $0x50] sm:$0xff]
    %v71 = vld [vmem:[%s2 + $0x58] sm:$0xff]
    %v72 = vld [vmem:[%s2 + $0x60] sm:$0xff]
    %v73 = vld [vmem:[%s2 + $0x68] sm:$0xff]
    %v74 = vld [vmem:[%s2 + $0x70] sm:$0xff]
    %v75 = vld [vmem:[%s2 + $0x78] sm:$0xff]
    %92 = vrot.lane.b32.xlu0 %v60, 16
    %v93 = vpop.permute.xlu0 %92
    %94 = vrot.lane.b32.xlu0 %v61, 16
    %v95 = vpop.permute.xlu0 %94
    %96 = vrot.lane.b32.xlu0 %v62, 16
    %v97 = vpop.permute.xlu0 %96
    %98 = vrot.lane.b32.xlu0 %v63, 16
    %v99 = vpop.permute.xlu0 %98
    %100 = vrot.lane.b32.xlu0 %v64, 16
    %v101 = vpop.permute.xlu0 %100
    %102 = vrot.lane.b32.xlu0 %v65, 16
    %v103 = vpop.permute.xlu0 %102
    %104 = vrot.lane.b32.xlu0 %v66, 16
    %v105 = vpop.permute.xlu0 %104
    %106 = vrot.lane.b32.xlu0 %v67, 16
    %v107 = vpop.permute.xlu0 %106
    %108 = vrot.lane.b32.xlu0 %v68, 16
    %v109 = vpop.permute.xlu0 %108
    %110 = vrot.lane.b32.xlu0 %v69, 16
    %v111 = vpop.permute.xlu0 %110
    %112 = vrot.lane.b32.xlu0 %v70, 16
    %v113 = vpop.permute.xlu0 %112
    %114 = vrot.lane.b32.xlu0 %v71, 16
    %v115 = vpop.permute.xlu0 %114
    %116 = vrot.lane.b32.xlu0 %v72, 16
    %v117 = vpop.permute.xlu0 %116
    %118 = vrot.lane.b32.xlu0 %v73, 16
    %v119 = vpop.permute.xlu0 %118
    %120 = vrot.lane.b32.xlu0 %v74, 16
    %v121 = vpop.permute.xlu0 %120
    %122 = vrot.lane.b32.xlu0 %v75, 16
    %v123 = vpop.permute.xlu0 %122
    %vm140 = vcmask 195712
    %141 = vst.msk [vmem:[#allocation2] sm:$0xff] %vm140, %v93
    %142 = vst.msk [vmem:[#allocation2 + $0x8] sm:$0xff] %vm140, %v95
    %143 = vst.msk [vmem:[#allocation2 + $0x10] sm:$0xff] %vm140, %v97
    %144 = vst.msk [vmem:[#allocation2 + $0x18] sm:$0xff] %vm140, %v99
    %145 = vst.msk [vmem:[#allocation2 + $0x20] sm:$0xff] %vm140, %v101
    %146 = vst.msk [vmem:[#allocation2 + $0x28] sm:$0xff] %vm140, %v103
    %147 = vst.msk [vmem:[#allocation2 + $0x30] sm:$0xff] %vm140, %v105
    %148 = vst.msk [vmem:[#allocation2 + $0x38] sm:$0xff] %vm140, %v107
    %149 = vst.msk [vmem:[#allocation2 + $0x40] sm:$0xff] %vm140, %v109
    %150 = vst.msk [vmem:[#allocation2 + $0x48] sm:$0xff] %vm140, %v111
    %151 = vst.msk [vmem:[#allocation2 + $0x50] sm:$0xff] %vm140, %v113
    %152 = vst.msk [vmem:[#allocation2 + $0x58] sm:$0xff] %vm140, %v115
    %153 = vst.msk [vmem:[#allocation2 + $0x60] sm:$0xff] %vm140, %v117
    %154 = vst.msk [vmem:[#allocation2 + $0x68] sm:$0xff] %vm140, %v119
    %155 = vst.msk [vmem:[#allocation2 + $0x70] sm:$0xff] %vm140, %v121
    %156 = vst.msk [vmem:[#allocation2 + $0x78] sm:$0xff] %vm140, %v123
    loop: start=0, step=1, limit=128
    $region22: #{tpu_custom_call.1} parent=1 // loop_pre_header
      _
    $region23: #{tpu_custom_call.1} parent=1 // loop_header
      %s158 = sphi 0, %s162
      %p159 = scmp.ge.s32.totalorder %s158, 128
    $region24: #{tpu_custom_call.1} parent=1 // loop_header_branch
      %161 = sbr.rel (%p159) target = $region28
    $region25: #{tpu_custom_call.1} parent=1 // loop_body
      %s163 = sadd.s32 %s43, %s158
      %s164 = sld [smem:[#allocation4 + %s163]]
      %s165 = sshra.s32 %s163, 7
      %s166 = sand.u32 %s163, 127
      %s167 = sadd.s32 %s165, 1
      %s168 = smul.u32 %s167, 128
      %s169 = sshra.s32 %s163, 7
      %s170 = sand.u32 %s163, 127
      %s171 = sadd.s32 %s168, %s170
      %s172 = sld [smem:[#allocation4 + %s171]]
      %s173 = scalar_lea.vmem %s1, %s164
      %v174 = vld [vmem:[%s173] sm:$0x1]
      %s175 = scalar_lea.vmem [#allocation2], %s158
      %vm176 = vcmask 57344
      %177 = vst.msk [vmem:[%s175] sm:$0x1] %vm176, %v174
      %s178 = scalar_lea.vmem %s1, %s172
      %v179 = vld [vmem:[%s178] sm:$0x1]
      %181 = vrot.lane.b32.xlu0 %v179, 8
      %v182 = vpop.permute.xlu0 %181
      %vm184 = vcmask 122944
      %185 = vst.msk [vmem:[%s175] sm:$0x1] %vm184, %v182
    $region26: #{tpu_custom_call.1} parent=1 // loop_footer
      %s162 = sadd.s32 1, %s158
    $region27: #{tpu_custom_call.1} parent=1 // loop_footer_branch
      %157 = sbr.rel target = $region23
    $region28: #{tpu_custom_call.1} parent=1 // loop_exit
      _
    %v186 = vld [vmem:[#allocation2] sm:$0xff]
    %v187 = vld [vmem:[#allocation2 + $0x8] sm:$0xff]
    %v188 = vld [vmem:[#allocation2 + $0x10] sm:$0xff]
    %v189 = vld [vmem:[#allocation2 + $0x18] sm:$0xff]
    %v190 = vld [vmem:[#allocation2 + $0x20] sm:$0xff]
    %v191 = vld [vmem:[#allocation2 + $0x28] sm:$0xff]
    %v192 = vld [vmem:[#allocation2 + $0x30] sm:$0xff]
    %v193 = vld [vmem:[#allocation2 + $0x38] sm:$0xff]
    %v194 = vld [vmem:[#allocation2 + $0x40] sm:$0xff]
    %v195 = vld [vmem:[#allocation2 + $0x48] sm:$0xff]
    %v196 = vld [vmem:[#allocation2 + $0x50] sm:$0xff]
    %v197 = vld [vmem:[#allocation2 + $0x58] sm:$0xff]
    %v198 = vld [vmem:[#allocation2 + $0x60] sm:$0xff]
    %v199 = vld [vmem:[#allocation2 + $0x68] sm:$0xff]
    %v200 = vld [vmem:[#allocation2 + $0x70] sm:$0xff]
    %v201 = vld [vmem:[#allocation2 + $0x78] sm:$0xff]
    %v202 = vld [vmem:[#allocation5] sm:$0xff]
    %v203 = vld [vmem:[#allocation5 + $0x8] sm:$0xff]
    %v204 = vld [vmem:[#allocation5 + $0x10] sm:$0xff]
    %v205 = vld [vmem:[#allocation5 + $0x18] sm:$0xff]
    %v206 = vld [vmem:[#allocation5 + $0x20] sm:$0xff]
    %v207 = vld [vmem:[#allocation5 + $0x28] sm:$0xff]
    %v208 = vld [vmem:[#allocation5 + $0x30] sm:$0xff]
    %v209 = vld [vmem:[#allocation5 + $0x38] sm:$0xff]
    %v210 = vld [vmem:[#allocation5 + $0x40] sm:$0xff]
    %v211 = vld [vmem:[#allocation5 + $0x48] sm:$0xff]
    %v212 = vld [vmem:[#allocation5 + $0x50] sm:$0xff]
    %v213 = vld [vmem:[#allocation5 + $0x58] sm:$0xff]
    %v214 = vld [vmem:[#allocation5 + $0x60] sm:$0xff]
    %v215 = vld [vmem:[#allocation5 + $0x68] sm:$0xff]
    %v216 = vld [vmem:[#allocation5 + $0x70] sm:$0xff]
    %v217 = vld [vmem:[#allocation5 + $0x78] sm:$0xff]
    %v218 = vld [vmem:[#allocation5 + $0x80] sm:$0xff]
    %v219 = vld [vmem:[#allocation5 + $0x88] sm:$0xff]
    %v220 = vld [vmem:[#allocation5 + $0x90] sm:$0xff]
    %v221 = vld [vmem:[#allocation5 + $0x98] sm:$0xff]
    %v222 = vld [vmem:[#allocation5 + $0xa0] sm:$0xff]
    %v223 = vld [vmem:[#allocation5 + $0xa8] sm:$0xff]
    %v224 = vld [vmem:[#allocation5 + $0xb0] sm:$0xff]
    %v225 = vld [vmem:[#allocation5 + $0xb8] sm:$0xff]
    %v226 = vld [vmem:[#allocation5 + $0xc0] sm:$0xff]
    %v227 = vld [vmem:[#allocation5 + $0xc8] sm:$0xff]
    %v228 = vld [vmem:[#allocation5 + $0xd0] sm:$0xff]
    %v229 = vld [vmem:[#allocation5 + $0xd8] sm:$0xff]
    %v230 = vld [vmem:[#allocation5 + $0xe0] sm:$0xff]
    %v231 = vld [vmem:[#allocation5 + $0xe8] sm:$0xff]
    %v232 = vld [vmem:[#allocation5 + $0xf0] sm:$0xff]
    %v233 = vld [vmem:[#allocation5 + $0xf8] sm:$0xff]
    %234 = vmatpush.msra.mxu0 %v232
    %235 = vmatpush.msra.mxu0 %v230
    %236 = vmatpush.msra.mxu0 %v228
    %237 = vmatpush.msra.mxu0 %v226
    %238 = vmatpush.msra.mxu0 %v224
    %239 = vmatpush.msra.mxu0 %v222
    %240 = vmatpush.msra.mxu0 %v220
    %241 = vmatpush.msra.mxu0 %v218
    %242 = vmatpush.msra.mxu0 %v216
    %243 = vmatpush.msra.mxu0 %v214
    %244 = vmatpush.msra.mxu0 %v212
    %245 = vmatpush.msra.mxu0 %v210
    %246 = vmatpush.msra.mxu0 %v208
    %247 = vmatpush.msra.mxu0 %v206
    %248 = vmatpush.msra.mxu0 %v204
    %249 = vmatpush.msra.mxu0 %v202
    %250 = vmatmul.f32.gmra.mxu0 %v186
    %v251 = vpop.f32.mrf.mxu0
    %v252 = vadd.f32 0.0, %v251
    %253 = vmatmul.f32.gmra.mxu0 %v187
    %v254 = vpop.f32.mrf.mxu0
    %v255 = vadd.f32 0.0, %v254
    %256 = vmatmul.f32.gmra.mxu0 %v188
    %v257 = vpop.f32.mrf.mxu0
    %v258 = vadd.f32 0.0, %v257
    %259 = vmatmul.f32.gmra.mxu0 %v189
    %v260 = vpop.f32.mrf.mxu0
    %v261 = vadd.f32 0.0, %v260
    %262 = vmatmul.f32.gmra.mxu0 %v190
    %v263 = vpop.f32.mrf.mxu0
    %v264 = vadd.f32 0.0, %v263
    %265 = vmatmul.f32.gmra.mxu0 %v191
    %v266 = vpop.f32.mrf.mxu0
    %v267 = vadd.f32 0.0, %v266
    %268 = vmatmul.f32.gmra.mxu0 %v192
    %v269 = vpop.f32.mrf.mxu0
    %v270 = vadd.f32 0.0, %v269
    %271 = vmatmul.f32.gmra.mxu0 %v193
    %v272 = vpop.f32.mrf.mxu0
    %v273 = vadd.f32 0.0, %v272
    %274 = vmatmul.f32.gmra.mxu0 %v194
    %v275 = vpop.f32.mrf.mxu0
    %v276 = vadd.f32 0.0, %v275
    %277 = vmatmul.f32.gmra.mxu0 %v195
    %v278 = vpop.f32.mrf.mxu0
    %v279 = vadd.f32 0.0, %v278
    %280 = vmatmul.f32.gmra.mxu0 %v196
    %v281 = vpop.f32.mrf.mxu0
    %v282 = vadd.f32 0.0, %v281
    %283 = vmatmul.f32.gmra.mxu0 %v197
    %v284 = vpop.f32.mrf.mxu0
    %v285 = vadd.f32 0.0, %v284
    %286 = vmatmul.f32.gmra.mxu0 %v198
    %v287 = vpop.f32.mrf.mxu0
    %v288 = vadd.f32 0.0, %v287
    %289 = vmatmul.f32.gmra.mxu0 %v199
    %v290 = vpop.f32.mrf.mxu0
    %v291 = vadd.f32 0.0, %v290
    %292 = vmatmul.f32.gmra.mxu0 %v200
    %v293 = vpop.f32.mrf.mxu0
    %v294 = vadd.f32 0.0, %v293
    %295 = vmatmul.f32.gmra.mxu0 %v201
    %v296 = vpop.f32.mrf.mxu0
    %v297 = vadd.f32 0.0, %v296
    %298 = vdwg.mxu0
    %299 = vmatpush.msra.mxu0 %v233
    %300 = vmatpush.msra.mxu0 %v231
    %301 = vmatpush.msra.mxu0 %v229
    %302 = vmatpush.msra.mxu0 %v227
    %303 = vmatpush.msra.mxu0 %v225
    %304 = vmatpush.msra.mxu0 %v223
    %305 = vmatpush.msra.mxu0 %v221
    %306 = vmatpush.msra.mxu0 %v219
    %307 = vmatpush.msra.mxu0 %v217
    %308 = vmatpush.msra.mxu0 %v215
    %309 = vmatpush.msra.mxu0 %v213
    %310 = vmatpush.msra.mxu0 %v211
    %311 = vmatpush.msra.mxu0 %v209
    %312 = vmatpush.msra.mxu0 %v207
    %313 = vmatpush.msra.mxu0 %v205
    %314 = vmatpush.msra.mxu0 %v203
    %315 = vmatmul.f32.gmra.mxu0 %v186
    %v316 = vpop.f32.mrf.mxu0
    %v317 = vadd.f32 0.0, %v316
    %318 = vmatmul.f32.gmra.mxu0 %v187
    %v319 = vpop.f32.mrf.mxu0
    %v320 = vadd.f32 0.0, %v319
    %321 = vmatmul.f32.gmra.mxu0 %v188
    %v322 = vpop.f32.mrf.mxu0
    %v323 = vadd.f32 0.0, %v322
    %324 = vmatmul.f32.gmra.mxu0 %v189
    %v325 = vpop.f32.mrf.mxu0
    %v326 = vadd.f32 0.0, %v325
    %327 = vmatmul.f32.gmra.mxu0 %v190
    %v328 = vpop.f32.mrf.mxu0
    %v329 = vadd.f32 0.0, %v328
    %330 = vmatmul.f32.gmra.mxu0 %v191
    %v331 = vpop.f32.mrf.mxu0
    %v332 = vadd.f32 0.0, %v331
    %333 = vmatmul.f32.gmra.mxu0 %v192
    %v334 = vpop.f32.mrf.mxu0
    %v335 = vadd.f32 0.0, %v334
    %336 = vmatmul.f32.gmra.mxu0 %v193
    %v337 = vpop.f32.mrf.mxu0
    %v338 = vadd.f32 0.0, %v337
    %339 = vmatmul.f32.gmra.mxu0 %v194
    %v340 = vpop.f32.mrf.mxu0
    %v341 = vadd.f32 0.0, %v340
    %342 = vmatmul.f32.gmra.mxu0 %v195
    %v343 = vpop.f32.mrf.mxu0
    %v344 = vadd.f32 0.0, %v343
    %345 = vmatmul.f32.gmra.mxu0 %v196
    %v346 = vpop.f32.mrf.mxu0
    %v347 = vadd.f32 0.0, %v346
    %348 = vmatmul.f32.gmra.mxu0 %v197
    %v349 = vpop.f32.mrf.mxu0
    %v350 = vadd.f32 0.0, %v349
    %351 = vmatmul.f32.gmra.mxu0 %v198
    %v352 = vpop.f32.mrf.mxu0
    %v353 = vadd.f32 0.0, %v352
    %354 = vmatmul.f32.gmra.mxu0 %v199
    %v355 = vpop.f32.mrf.mxu0
    %v356 = vadd.f32 0.0, %v355
    %357 = vmatmul.f32.gmra.mxu0 %v200
    %v358 = vpop.f32.mrf.mxu0
    %v359 = vadd.f32 0.0, %v358
    %360 = vmatmul.f32.gmra.mxu0 %v201
    %v361 = vpop.f32.mrf.mxu0
    %v362 = vadd.f32 0.0, %v361
    %363 = vdwg.mxu0
    %v364 = vlaneseq
    %v365 = vand.u32 %v364, 127
    %v366 = vld [vmem:[%s4] sm:$0x1]
    %v367 = vperm.slane %v366, 0
    %v368 = vmul.f32 %v252, %v367
    %v369 = vmul.f32 %v255, %v367
    %v370 = vmul.f32 %v258, %v367
    %v371 = vmul.f32 %v261, %v367
    %v372 = vmul.f32 %v264, %v367
    %v373 = vmul.f32 %v267, %v367
    %v374 = vmul.f32 %v270, %v367
    %v375 = vmul.f32 %v273, %v367
    %v376 = vmul.f32 %v276, %v367
    %v377 = vmul.f32 %v279, %v367
    %v378 = vmul.f32 %v282, %v367
    %v379 = vmul.f32 %v285, %v367
    %v380 = vmul.f32 %v288, %v367
    %v381 = vmul.f32 %v291, %v367
    %v382 = vmul.f32 %v294, %v367
    %v383 = vmul.f32 %v297, %v367
    %384 = vadd.xlane.f32.xlu0 %v368
    %v385 = vpop.xlane.xlu0 %384
    %386 = vadd.xlane.f32.xlu0 %v369
    %v387 = vpop.xlane.xlu0 %386
    %388 = vadd.xlane.f32.xlu0 %v370
    %v389 = vpop.xlane.xlu0 %388
    %390 = vadd.xlane.f32.xlu0 %v371
    %v391 = vpop.xlane.xlu0 %390
    %392 = vadd.xlane.f32.xlu0 %v372
    %v393 = vpop.xlane.xlu0 %392
    %394 = vadd.xlane.f32.xlu0 %v373
    %v395 = vpop.xlane.xlu0 %394
    %396 = vadd.xlane.f32.xlu0 %v374
    %v397 = vpop.xlane.xlu0 %396
    %398 = vadd.xlane.f32.xlu0 %v375
    %v399 = vpop.xlane.xlu0 %398
    %400 = vadd.xlane.f32.xlu0 %v376
    %v401 = vpop.xlane.xlu0 %400
    %402 = vadd.xlane.f32.xlu0 %v377
    %v403 = vpop.xlane.xlu0 %402
    %404 = vadd.xlane.f32.xlu0 %v378
    %v405 = vpop.xlane.xlu0 %404
    %406 = vadd.xlane.f32.xlu0 %v379
    %v407 = vpop.xlane.xlu0 %406
    %408 = vadd.xlane.f32.xlu0 %v380
    %v409 = vpop.xlane.xlu0 %408
    %410 = vadd.xlane.f32.xlu0 %v381
    %v411 = vpop.xlane.xlu0 %410
    %412 = vadd.xlane.f32.xlu0 %v382
    %v413 = vpop.xlane.xlu0 %412
    %414 = vadd.xlane.f32.xlu0 %v383
    %v415 = vpop.xlane.xlu0 %414
    %vm416 = vcmp.gt.f32.partialorder %v385, 0.0
    %vm417 = vcmp.gt.f32.partialorder %v387, 0.0
    %vm418 = vcmp.gt.f32.partialorder %v389, 0.0
    %vm419 = vcmp.gt.f32.partialorder %v391, 0.0
    %vm420 = vcmp.gt.f32.partialorder %v393, 0.0
    %vm421 = vcmp.gt.f32.partialorder %v395, 0.0
    %vm422 = vcmp.gt.f32.partialorder %v397, 0.0
    %vm423 = vcmp.gt.f32.partialorder %v399, 0.0
    %vm424 = vcmp.gt.f32.partialorder %v401, 0.0
    %vm425 = vcmp.gt.f32.partialorder %v403, 0.0
    %vm426 = vcmp.gt.f32.partialorder %v405, 0.0
    %vm427 = vcmp.gt.f32.partialorder %v407, 0.0
    %vm428 = vcmp.gt.f32.partialorder %v409, 0.0
    %vm429 = vcmp.gt.f32.partialorder %v411, 0.0
    %vm430 = vcmp.gt.f32.partialorder %v413, 0.0
    %vm431 = vcmp.gt.f32.partialorder %v415, 0.0
    %v432 = vmul.f32 %v385, 0.2
    %v433 = vmul.f32 %v387, 0.2
    %v434 = vmul.f32 %v389, 0.2
    %v435 = vmul.f32 %v391, 0.2
    %v436 = vmul.f32 %v393, 0.2
    %v437 = vmul.f32 %v395, 0.2
    %v438 = vmul.f32 %v397, 0.2
    %v439 = vmul.f32 %v399, 0.2
    %v440 = vmul.f32 %v401, 0.2
    %v441 = vmul.f32 %v403, 0.2
    %v442 = vmul.f32 %v405, 0.2
    %v443 = vmul.f32 %v407, 0.2
    %v444 = vmul.f32 %v409, 0.2
    %v445 = vmul.f32 %v411, 0.2
    %v446 = vmul.f32 %v413, 0.2
    %v447 = vmul.f32 %v415, 0.2
    %v448 = vsel %vm416, %v385, %v432
    %v449 = vsel %vm417, %v387, %v433
    %v450 = vsel %vm418, %v389, %v434
    %v451 = vsel %vm419, %v391, %v435
    %v452 = vsel %vm420, %v393, %v436
    %v453 = vsel %vm421, %v395, %v437
    %v454 = vsel %vm422, %v397, %v438
    %v455 = vsel %vm423, %v399, %v439
    %v456 = vsel %vm424, %v401, %v440
    %v457 = vsel %vm425, %v403, %v441
    %v458 = vsel %vm426, %v405, %v442
    %v459 = vsel %vm427, %v407, %v443
    %v460 = vsel %vm428, %v409, %v444
    %v461 = vsel %vm429, %v411, %v445
    %v462 = vsel %vm430, %v413, %v446
    %v463 = vsel %vm431, %v415, %v447
    %v464 = vsub.f32 0.0, %v448
    %v465 = vsub.f32 0.0, %v449
    %v466 = vsub.f32 0.0, %v450
    %v467 = vsub.f32 0.0, %v451
    %v468 = vsub.f32 0.0, %v452
    %v469 = vsub.f32 0.0, %v453
    %v470 = vsub.f32 0.0, %v454
    %v471 = vsub.f32 0.0, %v455
    %v472 = vsub.f32 0.0, %v456
    %v473 = vsub.f32 0.0, %v457
    %v474 = vsub.f32 0.0, %v458
    %v475 = vsub.f32 0.0, %v459
    %v476 = vsub.f32 0.0, %v460
    %v477 = vsub.f32 0.0, %v461
    %v478 = vsub.f32 0.0, %v462
    %v479 = vsub.f32 0.0, %v463
    %v480 = vmul.f32 %v464, 1.442695
    %v481 = vpow.pop %v480
    %v482 = vmul.f32 %v465, 1.442695
    %v483 = vpow.pop %v482
    %v484 = vmul.f32 %v466, 1.442695
    %v485 = vpow.pop %v484
    %v486 = vmul.f32 %v467, 1.442695
    %v487 = vpow.pop %v486
    %v488 = vmul.f32 %v468, 1.442695
    %v489 = vpow.pop %v488
    %v490 = vmul.f32 %v469, 1.442695
    %v491 = vpow.pop %v490
    %v492 = vmul.f32 %v470, 1.442695
    %v493 = vpow.pop %v492
    %v494 = vmul.f32 %v471, 1.442695
    %v495 = vpow.pop %v494
    %v496 = vmul.f32 %v472, 1.442695
    %v497 = vpow.pop %v496
    %v498 = vmul.f32 %v473, 1.442695
    %v499 = vpow.pop %v498
    %v500 = vmul.f32 %v474, 1.442695
    %v501 = vpow.pop %v500
    %v502 = vmul.f32 %v475, 1.442695
    %v503 = vpow.pop %v502
    %v504 = vmul.f32 %v476, 1.442695
    %v505 = vpow.pop %v504
    %v506 = vmul.f32 %v477, 1.442695
    %v507 = vpow.pop %v506
    %v508 = vmul.f32 %v478, 1.442695
    %v509 = vpow.pop %v508
    %v510 = vmul.f32 %v479, 1.442695
    %v511 = vpow.pop %v510
    %v512 = vmul.f32 %v481, %v252
    %v513 = vmul.f32 %v483, %v255
    %v514 = vmul.f32 %v485, %v258
    %v515 = vmul.f32 %v487, %v261
    %v516 = vmul.f32 %v489, %v264
    %v517 = vmul.f32 %v491, %v267
    %v518 = vmul.f32 %v493, %v270
    %v519 = vmul.f32 %v495, %v273
    %v520 = vmul.f32 %v497, %v276
    %v521 = vmul.f32 %v499, %v279
    %v522 = vmul.f32 %v501, %v282
    %v523 = vmul.f32 %v503, %v285
    %v524 = vmul.f32 %v505, %v288
    %v525 = vmul.f32 %v507, %v291
    %v526 = vmul.f32 %v509, %v294
    %v527 = vmul.f32 %v511, %v297
    %vm528 = vcmp.eq.s32.totalorder %v365, 8
    %v529 = vsel %vm528, %v481, 0.0
    %v530 = vsel %vm528, %v483, 0.0
    %v531 = vsel %vm528, %v485, 0.0
    %v532 = vsel %vm528, %v487, 0.0
    %v533 = vsel %vm528, %v489, 0.0
    %v534 = vsel %vm528, %v491, 0.0
    %v535 = vsel %vm528, %v493, 0.0
    %v536 = vsel %vm528, %v495, 0.0
    %v537 = vsel %vm528, %v497, 0.0
    %v538 = vsel %vm528, %v499, 0.0
    %v539 = vsel %vm528, %v501, 0.0
    %v540 = vsel %vm528, %v503, 0.0
    %v541 = vsel %vm528, %v505, 0.0
    %v542 = vsel %vm528, %v507, 0.0
    %v543 = vsel %vm528, %v509, 0.0
    %v544 = vsel %vm528, %v511, 0.0
    %v545 = vadd.f32 %v512, %v529
    %v546 = vadd.f32 %v513, %v530
    %v547 = vadd.f32 %v514, %v531
    %v548 = vadd.f32 %v515, %v532
    %v549 = vadd.f32 %v516, %v533
    %v550 = vadd.f32 %v517, %v534
    %v551 = vadd.f32 %v518, %v535
    %v552 = vadd.f32 %v519, %v536
    %v553 = vadd.f32 %v520, %v537
    %v554 = vadd.f32 %v521, %v538
    %v555 = vadd.f32 %v522, %v539
    %v556 = vadd.f32 %v523, %v540
    %v557 = vadd.f32 %v524, %v541
    %v558 = vadd.f32 %v525, %v542
    %v559 = vadd.f32 %v526, %v543
    %v560 = vadd.f32 %v527, %v544
    %561 = vst [vmem:[#allocation8] sm:$0xff] %v545
    %562 = vst [vmem:[#allocation8 + $0x10] sm:$0xff] %v546
    %563 = vst [vmem:[#allocation8 + $0x20] sm:$0xff] %v547
    %564 = vst [vmem:[#allocation8 + $0x30] sm:$0xff] %v548
    %565 = vst [vmem:[#allocation8 + $0x40] sm:$0xff] %v549
    %566 = vst [vmem:[#allocation8 + $0x50] sm:$0xff] %v550
    %567 = vst [vmem:[#allocation8 + $0x60] sm:$0xff] %v551
    %568 = vst [vmem:[#allocation8 + $0x70] sm:$0xff] %v552
    %569 = vst [vmem:[#allocation8 + $0x80] sm:$0xff] %v553
    %570 = vst [vmem:[#allocation8 + $0x90] sm:$0xff] %v554
    %571 = vst [vmem:[#allocation8 + $0xa0] sm:$0xff] %v555
    %572 = vst [vmem:[#allocation8 + $0xb0] sm:$0xff] %v556
    %573 = vst [vmem:[#allocation8 + $0xc0] sm:$0xff] %v557
    %574 = vst [vmem:[#allocation8 + $0xd0] sm:$0xff] %v558
    %575 = vst [vmem:[#allocation8 + $0xe0] sm:$0xff] %v559
    %576 = vst [vmem:[#allocation8 + $0xf0] sm:$0xff] %v560
    %v577 = vld [vmem:[%s4 + $0x1] sm:$0x1]
    %v578 = vperm.slane %v577, 0
    %v579 = vmul.f32 %v317, %v578
    %v580 = vmul.f32 %v320, %v578
    %v581 = vmul.f32 %v323, %v578
    %v582 = vmul.f32 %v326, %v578
    %v583 = vmul.f32 %v329, %v578
    %v584 = vmul.f32 %v332, %v578
    %v585 = vmul.f32 %v335, %v578
    %v586 = vmul.f32 %v338, %v578
    %v587 = vmul.f32 %v341, %v578
    %v588 = vmul.f32 %v344, %v578
    %v589 = vmul.f32 %v347, %v578
    %v590 = vmul.f32 %v350, %v578
    %v591 = vmul.f32 %v353, %v578
    %v592 = vmul.f32 %v356, %v578
    %v593 = vmul.f32 %v359, %v578
    %v594 = vmul.f32 %v362, %v578
    %595 = vadd.xlane.f32.xlu0 %v579
    %v596 = vpop.xlane.xlu0 %595
    %597 = vadd.xlane.f32.xlu0 %v580
    %v598 = vpop.xlane.xlu0 %597
    %599 = vadd.xlane.f32.xlu0 %v581
    %v600 = vpop.xlane.xlu0 %599
    %601 = vadd.xlane.f32.xlu0 %v582
    %v602 = vpop.xlane.xlu0 %601
    %603 = vadd.xlane.f32.xlu0 %v583
    %v604 = vpop.xlane.xlu0 %603
    %605 = vadd.xlane.f32.xlu0 %v584
    %v606 = vpop.xlane.xlu0 %605
    %607 = vadd.xlane.f32.xlu0 %v585
    %v608 = vpop.xlane.xlu0 %607
    %609 = vadd.xlane.f32.xlu0 %v586
    %v610 = vpop.xlane.xlu0 %609
    %611 = vadd.xlane.f32.xlu0 %v587
    %v612 = vpop.xlane.xlu0 %611
    %613 = vadd.xlane.f32.xlu0 %v588
    %v614 = vpop.xlane.xlu0 %613
    %615 = vadd.xlane.f32.xlu0 %v589
    %v616 = vpop.xlane.xlu0 %615
    %617 = vadd.xlane.f32.xlu0 %v590
    %v618 = vpop.xlane.xlu0 %617
    %619 = vadd.xlane.f32.xlu0 %v591
    %v620 = vpop.xlane.xlu0 %619
    %621 = vadd.xlane.f32.xlu0 %v592
    %v622 = vpop.xlane.xlu0 %621
    %623 = vadd.xlane.f32.xlu0 %v593
    %v624 = vpop.xlane.xlu0 %623
    %625 = vadd.xlane.f32.xlu0 %v594
    %v626 = vpop.xlane.xlu0 %625
    %vm627 = vcmp.gt.f32.partialorder %v596, 0.0
    %vm628 = vcmp.gt.f32.partialorder %v598, 0.0
    %vm629 = vcmp.gt.f32.partialorder %v600, 0.0
    %vm630 = vcmp.gt.f32.partialorder %v602, 0.0
    %vm631 = vcmp.gt.f32.partialorder %v604, 0.0
    %vm632 = vcmp.gt.f32.partialorder %v606, 0.0
    %vm633 = vcmp.gt.f32.partialorder %v608, 0.0
    %vm634 = vcmp.gt.f32.partialorder %v610, 0.0
    %vm635 = vcmp.gt.f32.partialorder %v612, 0.0
    %vm636 = vcmp.gt.f32.partialorder %v614, 0.0
    %vm637 = vcmp.gt.f32.partialorder %v616, 0.0
    %vm638 = vcmp.gt.f32.partialorder %v618, 0.0
    %vm639 = vcmp.gt.f32.partialorder %v620, 0.0
    %vm640 = vcmp.gt.f32.partialorder %v622, 0.0
    %vm641 = vcmp.gt.f32.partialorder %v624, 0.0
    %vm642 = vcmp.gt.f32.partialorder %v626, 0.0
    %v643 = vmul.f32 %v596, 0.2
    %v644 = vmul.f32 %v598, 0.2
    %v645 = vmul.f32 %v600, 0.2
    %v646 = vmul.f32 %v602, 0.2
    %v647 = vmul.f32 %v604, 0.2
    %v648 = vmul.f32 %v606, 0.2
    %v649 = vmul.f32 %v608, 0.2
    %v650 = vmul.f32 %v610, 0.2
    %v651 = vmul.f32 %v612, 0.2
    %v652 = vmul.f32 %v614, 0.2
    %v653 = vmul.f32 %v616, 0.2
    %v654 = vmul.f32 %v618, 0.2
    %v655 = vmul.f32 %v620, 0.2
    %v656 = vmul.f32 %v622, 0.2
    %v657 = vmul.f32 %v624, 0.2
    %v658 = vmul.f32 %v626, 0.2
    %v659 = vsel %vm627, %v596, %v643
    %v660 = vsel %vm628, %v598, %v644
    %v661 = vsel %vm629, %v600, %v645
    %v662 = vsel %vm630, %v602, %v646
    %v663 = vsel %vm631, %v604, %v647
    %v664 = vsel %vm632, %v606, %v648
    %v665 = vsel %vm633, %v608, %v649
    %v666 = vsel %vm634, %v610, %v650
    %v667 = vsel %vm635, %v612, %v651
    %v668 = vsel %vm636, %v614, %v652
    %v669 = vsel %vm637, %v616, %v653
    %v670 = vsel %vm638, %v618, %v654
    %v671 = vsel %vm639, %v620, %v655
    %v672 = vsel %vm640, %v622, %v656
    %v673 = vsel %vm641, %v624, %v657
    %v674 = vsel %vm642, %v626, %v658
    %v675 = vsub.f32 0.0, %v659
    %v676 = vsub.f32 0.0, %v660
    %v677 = vsub.f32 0.0, %v661
    %v678 = vsub.f32 0.0, %v662
    %v679 = vsub.f32 0.0, %v663
    %v680 = vsub.f32 0.0, %v664
    %v681 = vsub.f32 0.0, %v665
    %v682 = vsub.f32 0.0, %v666
    %v683 = vsub.f32 0.0, %v667
    %v684 = vsub.f32 0.0, %v668
    %v685 = vsub.f32 0.0, %v669
    %v686 = vsub.f32 0.0, %v670
    %v687 = vsub.f32 0.0, %v671
    %v688 = vsub.f32 0.0, %v672
    %v689 = vsub.f32 0.0, %v673
    %v690 = vsub.f32 0.0, %v674
    %v691 = vmul.f32 %v675, 1.442695
    %v692 = vpow.pop %v691
    %v693 = vmul.f32 %v676, 1.442695
    %v694 = vpow.pop %v693
    %v695 = vmul.f32 %v677, 1.442695
    %v696 = vpow.pop %v695
    %v697 = vmul.f32 %v678, 1.442695
    %v698 = vpow.pop %v697
    %v699 = vmul.f32 %v679, 1.442695
    %v700 = vpow.pop %v699
    %v701 = vmul.f32 %v680, 1.442695
    %v702 = vpow.pop %v701
    %v703 = vmul.f32 %v681, 1.442695
    %v704 = vpow.pop %v703
    %v705 = vmul.f32 %v682, 1.442695
    %v706 = vpow.pop %v705
    %v707 = vmul.f32 %v683, 1.442695
    %v708 = vpow.pop %v707
    %v709 = vmul.f32 %v684, 1.442695
    %v710 = vpow.pop %v709
    %v711 = vmul.f32 %v685, 1.442695
    %v712 = vpow.pop %v711
    %v713 = vmul.f32 %v686, 1.442695
    %v714 = vpow.pop %v713
    %v715 = vmul.f32 %v687, 1.442695
    %v716 = vpow.pop %v715
    %v717 = vmul.f32 %v688, 1.442695
    %v718 = vpow.pop %v717
    %v719 = vmul.f32 %v689, 1.442695
    %v720 = vpow.pop %v719
    %v721 = vmul.f32 %v690, 1.442695
    %v722 = vpow.pop %v721
    %v723 = vmul.f32 %v692, %v317
    %v724 = vmul.f32 %v694, %v320
    %v725 = vmul.f32 %v696, %v323
    %v726 = vmul.f32 %v698, %v326
    %v727 = vmul.f32 %v700, %v329
    %v728 = vmul.f32 %v702, %v332
    %v729 = vmul.f32 %v704, %v335
    %v730 = vmul.f32 %v706, %v338
    %v731 = vmul.f32 %v708, %v341
    %v732 = vmul.f32 %v710, %v344
    %v733 = vmul.f32 %v712, %v347
    %v734 = vmul.f32 %v714, %v350
    %v735 = vmul.f32 %v716, %v353
    %v736 = vmul.f32 %v718, %v356
    %v737 = vmul.f32 %v720, %v359
    %v738 = vmul.f32 %v722, %v362
    %v739 = vsel %vm528, %v692, 0.0
    %v740 = vsel %vm528, %v694, 0.0
    %v741 = vsel %vm528, %v696, 0.0
    %v742 = vsel %vm528, %v698, 0.0
    %v743 = vsel %vm528, %v700, 0.0
    %v744 = vsel %vm528, %v702, 0.0
    %v745 = vsel %vm528, %v704, 0.0
    %v746 = vsel %vm528, %v706, 0.0
    %v747 = vsel %vm528, %v708, 0.0
    %v748 = vsel %vm528, %v710, 0.0
    %v749 = vsel %vm528, %v712, 0.0
    %v750 = vsel %vm528, %v714, 0.0
    %v751 = vsel %vm528, %v716, 0.0
    %v752 = vsel %vm528, %v718, 0.0
    %v753 = vsel %vm528, %v720, 0.0
    %v754 = vsel %vm528, %v722, 0.0
    %v755 = vadd.f32 %v723, %v739
    %v756 = vadd.f32 %v724, %v740
    %v757 = vadd.f32 %v725, %v741
    %v758 = vadd.f32 %v726, %v742
    %v759 = vadd.f32 %v727, %v743
    %v760 = vadd.f32 %v728, %v744
    %v761 = vadd.f32 %v729, %v745
    %v762 = vadd.f32 %v730, %v746
    %v763 = vadd.f32 %v731, %v747
    %v764 = vadd.f32 %v732, %v748
    %v765 = vadd.f32 %v733, %v749
    %v766 = vadd.f32 %v734, %v750
    %v767 = vadd.f32 %v735, %v751
    %v768 = vadd.f32 %v736, %v752
    %v769 = vadd.f32 %v737, %v753
    %v770 = vadd.f32 %v738, %v754
    %771 = vst [vmem:[#allocation8 + $0x8] sm:$0xff] %v755
    %772 = vst [vmem:[#allocation8 + $0x18] sm:$0xff] %v756
    %773 = vst [vmem:[#allocation8 + $0x28] sm:$0xff] %v757
    %774 = vst [vmem:[#allocation8 + $0x38] sm:$0xff] %v758
    %775 = vst [vmem:[#allocation8 + $0x48] sm:$0xff] %v759
    %776 = vst [vmem:[#allocation8 + $0x58] sm:$0xff] %v760
    %777 = vst [vmem:[#allocation8 + $0x68] sm:$0xff] %v761
    %778 = vst [vmem:[#allocation8 + $0x78] sm:$0xff] %v762
    %779 = vst [vmem:[#allocation8 + $0x88] sm:$0xff] %v763
    %780 = vst [vmem:[#allocation8 + $0x98] sm:$0xff] %v764
    %781 = vst [vmem:[#allocation8 + $0xa8] sm:$0xff] %v765
    %782 = vst [vmem:[#allocation8 + $0xb8] sm:$0xff] %v766
    %783 = vst [vmem:[#allocation8 + $0xc8] sm:$0xff] %v767
    %784 = vst [vmem:[#allocation8 + $0xd8] sm:$0xff] %v768
    %785 = vst [vmem:[#allocation8 + $0xe8] sm:$0xff] %v769
    %786 = vst [vmem:[#allocation8 + $0xf8] sm:$0xff] %v770
    // Predicated region
    $region29: #{tpu_custom_call.1} parent=1 // pred_check
      _
    $region30: #{tpu_custom_call.1} parent=1 // pred_check_branch
      %788 = sbr.rel (0) target = $region32
    $region31: #{tpu_custom_call.1} parent=1 // pred_region
      %790 = vsyncadd [#allocation7], 0
      %s791 = sshll.u32 [#allocation8], 4
      %s792 = int_to_ptr.vmem [resolvable:$true] %s791
      %s793 = sshll.u32 %s5, 4
      %s794 = int_to_ptr.hbm [resolvable:$true] %s793
      %799 = dma.vmem_to_hbm [thread:$0]  %s792, 4096, %s794, [#allocation7], 256, 256, 16
    $region32: #{tpu_custom_call.1} parent=1 // pred_fallthru
      _
    // Predicated region
    $region33: #{tpu_custom_call.1} parent=1 // pred_check
      _
    $region34: #{tpu_custom_call.1} parent=1 // pred_check_branch
      %801 = sbr.rel (0) target = $region36
    $region35: #{tpu_custom_call.1} parent=1 // pred_region
      %803 = dma.done [#allocation7], 4096
    $region36: #{tpu_custom_call.1} parent=1 // pred_fallthru
      _
    %804 = vsyncpa [#allocation6], 1
    %805 = vsyncpa [#allocation7], 1

</llo_original>
